<compile_context>
chip_gen: v6e
topology: v6e:2x2x1
jax: 0.10.0
libtpu: 0.0.40
codegen_flags: <defaults>
</compile_context>

<pallas_src>
import functools

import jax
import jax.numpy as jnp
from jax.experimental import pallas as pl
from jax.experimental.pallas import tpu as pltpu

_FILTERS = 1
_FLAT = 7 * 7 * _FILTERS     # 49 input features
_HIDDEN = 128
_OUT = 49
_NEG_SLOPE = 0.01            # F.leaky_relu default negative_slope


def _policy_head_kernel(x_ref, w1_ref, b1_ref, w2_ref, b2_ref, o_ref):
    # fc1: (tb,49) @ (49,128) on the MXU, f32 accumulation (Mosaic handles the
    # K=49 contraction; no host-side padding needed).
    h = jnp.dot(x_ref[...], w1_ref[...], preferred_element_type=jnp.float32)
    h = h + b1_ref[...]                       # bias add in f32
    h = jnp.maximum(h, _NEG_SLOPE * h)        # leaky_relu in f32 (VPU)
    # fc2: cast activation to the weight dtype (no-op in f32; bf16 path keeps
    # bf16 confined to MXU operands, accumulation stays f32).
    o = jnp.dot(h.astype(w2_ref.dtype), w2_ref[...],
                preferred_element_type=jnp.float32)
    o = o + b2_ref[...]
    o_ref[...] = o.astype(o_ref.dtype)


def _round_up(n, m):
    return ((n + m - 1) // m) * m


def _pick_tb(B):
    """Batch tile: single step for tiny B, >=2 steps (v7x's 2 TCs) for big B."""
    if B <= 64:
        return B                                   # block == full array rows
    # >=2 grid steps so dimension_semantics=("parallel",) feeds both v7x TCs;
    # 16-row granularity covers bf16 sublane packing; cap at 512 rows/tile.
    return min(512, _round_up(pl.cdiv(B, 2), 16))


@functools.partial(jax.jit, static_argnames=("param_dtype",))
def policy_head(x, w1, b1, w2, b2, *, param_dtype=jnp.bfloat16):
    """PolicyHead forward.

    x : (B, 49)
    w1: (49, 128), b1: (128,)   (in, out) layout == PyTorch fc1.weight.T
    w2: (128, 49), b2: (49,)
    Returns (B, 7, 7) float32.

    param_dtype controls the MXU operand dtype (default bf16 on all TPU
    generations: ~2x less DMA, f32 accumulation; expect ~1e-2 level error).
    Use param_dtype=jnp.float32 for bit-faithful f32 semantics.
    """
    B = x.shape[0]
    tb = _pick_tb(B)
    grid = (pl.cdiv(B, tb),)

    # MXU operand dtype; biases (and all post-matmul math) stay f32.
    x_c = x.astype(param_dtype)
    w1_c = w1.astype(param_dtype)
    w2_c = w2.astype(param_dtype)
    b1_r = b1.reshape(1, _HIDDEN).astype(jnp.float32)
    b2_r = b2.reshape(1, _OUT).astype(jnp.float32)

    itemsize = jnp.dtype(param_dtype).itemsize
    cost = pl.CostEstimate(
        flops=2 * B * (_FLAT * _HIDDEN + _HIDDEN * _OUT),
        transcendentals=0,
        bytes_accessed=(B * _FLAT * itemsize                 # x
                        + (_FLAT * _HIDDEN + _HIDDEN * _OUT) * itemsize  # w1, w2
                        + (_HIDDEN + _OUT) * 4                # biases
                        + B * _OUT * 4),                      # output
    )

    out_flat = pl.pallas_call(
        _policy_head_kernel,
        out_shape=jax.ShapeDtypeStruct((B, _OUT), jnp.float32),
        grid=grid,
        in_specs=[
            pl.BlockSpec((tb, _FLAT), lambda i: (i, 0)),        # x batch tile
            pl.BlockSpec((_FLAT, _HIDDEN), lambda i: (0, 0)),   # w1 (VMEM-resident)
            pl.BlockSpec((1, _HIDDEN), lambda i: (0, 0)),       # b1 (VMEM-resident)
            pl.BlockSpec((_HIDDEN, _OUT), lambda i: (0, 0)),    # w2 (VMEM-resident)
            pl.BlockSpec((1, _OUT), lambda i: (0, 0)),          # b2 (VMEM-resident)
        ],
        out_specs=pl.BlockSpec((tb, _OUT), lambda i: (i, 0)),
        compiler_params=pltpu.CompilerParams(
            dimension_semantics=("parallel",)),  # shard batch tiles across TCs
        cost_estimate=cost,
    )(x_c, w1_c, b1_r, w2_c, b2_r)

    return out_flat.reshape(B, 7, 7)


def _ref_forward(x, w1, b1, w2, b2):
    h = x @ w1 + b1
    h = jnp.where(h > 0, h, _NEG_SLOPE * h)
    o = h @ w2 + b2
    return o.reshape(-1, 7, 7)


def _init_params(key):
    # nn.Linear default init: U(-1/sqrt(fan_in), 1/sqrt(fan_in)).
    k1, k2, k3, k4 = jax.random.split(key, 4)
    bound1 = 1.0 / jnp.sqrt(jnp.float32(_FLAT))
    bound2 = 1.0 / jnp.sqrt(jnp.float32(_HIDDEN))
    w1 = jax.random.uniform(k1, (_FLAT, _HIDDEN), jnp.float32, -bound1, bound1)
    b1 = jax.random.uniform(k2, (_HIDDEN,), jnp.float32, -bound1, bound1)
    w2 = jax.random.uniform(k3, (_HIDDEN, _OUT), jnp.float32, -bound2, bound2)
    b2 = jax.random.uniform(k4, (_OUT,), jnp.float32, -bound2, bound2)
    return w1, b1, w2, b2


if __name__ == "__main__":
    key = jax.random.PRNGKey(0)
    kx1, kx2, kp = jax.random.split(key, 3)
    w1, b1, w2, b2 = _init_params(kp)

    # 1) Tiny batch, single grid step, exact f32 path, tight tolerance.
    B = 2
    x = jax.random.normal(kx1, (B, _FLAT), jnp.float32)
    out = jax.block_until_ready(
        policy_head(x, w1, b1, w2, b2, param_dtype=jnp.float32))
    ref = _ref_forward(x, w1, b1, w2, b2)
    assert out.shape == (B, 7, 7)
    assert jnp.allclose(out, ref, atol=1e-5, rtol=1e-5)

    # 2) Multi-step grid with a partial edge tile (B % tb != 0), exact f32.
    B2 = 260
    x2 = jax.random.normal(kx2, (B2, _FLAT), jnp.float32)
    ref2 = _ref_forward(x2, w1, b1, w2, b2)
    out2 = jax.block_until_ready(
        policy_head(x2, w1, b1, w2, b2, param_dtype=jnp.float32))
    assert out2.shape == (B2, 7, 7)
    assert jnp.allclose(out2, ref2, atol=1e-5, rtol=1e-5)

    # 3) Default bf16-operand path (f32 accumulation), loose tolerance.
    out3 = jax.block_until_ready(policy_head(x2, w1, b1, w2, b2))
    assert out3.shape == (B2, 7, 7)
    assert jnp.allclose(out3, ref2, atol=3e-2, rtol=3e-2)

    print("KERNEL_OK")
</pallas_src>

<mosaic_0001>
module attributes {stable_mosaic.version = 11 : i64} {
  func.func @_policy_head_kernel(%arg0: i32, %arg1: memref<2x49xf32, #tpu.memory_space<vmem>>, %arg2: memref<49x128xf32, #tpu.memory_space<vmem>>, %arg3: memref<1x128xf32, #tpu.memory_space<vmem>>, %arg4: memref<128x49xf32, #tpu.memory_space<vmem>>, %arg5: memref<1x49xf32, #tpu.memory_space<vmem>>, %arg6: memref<2x49xf32, #tpu.memory_space<vmem>>) attributes {dimension_semantics = [#tpu.dimension_semantics<parallel>], iteration_bounds = array<i64: 1>, scalar_prefetch = 0 : i64, scratch_operands = 0 : i64, tpu.core_type = #tpu.core_type<tc>, window_params = [{transform_indices = @transform_0, window_bounds = array<i64: 2, 49>}, {pipeline_mode = #tpu.pipeline_mode<synchronous>, transform_indices = @transform_1, window_bounds = array<i64: 49, 128>}, {pipeline_mode = #tpu.pipeline_mode<synchronous>, transform_indices = @transform_2, window_bounds = array<i64: 1, 128>}, {pipeline_mode = #tpu.pipeline_mode<synchronous>, transform_indices = @transform_3, window_bounds = array<i64: 128, 49>}, {pipeline_mode = #tpu.pipeline_mode<synchronous>, transform_indices = @transform_4, window_bounds = array<i64: 1, 49>}, {transform_indices = @transform_5, window_bounds = array<i64: 2, 49>}]} {
    %c0 = arith.constant 0 : index
    %c0_0 = arith.constant 0 : index
    %0 = vector.load %arg1[%c0, %c0_0] : memref<2x49xf32, #tpu.memory_space<vmem>>, vector<2x49xf32>
    %c0_1 = arith.constant 0 : index
    %c0_2 = arith.constant 0 : index
    %1 = vector.load %arg2[%c0_1, %c0_2] : memref<49x128xf32, #tpu.memory_space<vmem>>, vector<49x128xf32>
    %cst = arith.constant dense<0.000000e+00> : vector<2x128xf32>
    %2 = tpu.matmul %0, %1, %cst {dimension_numbers = #tpu.dot_dimension_numbers<[1], [0], [0], [1], [0, 0, 1, 1], [], []>} : vector<2x49xf32>, vector<49x128xf32>, vector<2x128xf32> -> vector<2x128xf32>
    %c0_3 = arith.constant 0 : index
    %c0_4 = arith.constant 0 : index
    %3 = vector.load %arg3[%c0_3, %c0_4] : memref<1x128xf32, #tpu.memory_space<vmem>>, vector<1x128xf32>
    %4 = vector.broadcast %3 : vector<1x128xf32> to vector<2x128xf32>
    %5 = arith.addf %2, %4 : vector<2x128xf32>
    %cst_5 = arith.constant 0.00999999977 : f32
    %6 = vector.broadcast %cst_5 : f32 to vector<2x128xf32>
    %7 = arith.mulf %6, %5 : vector<2x128xf32>
    %8 = arith.maximumf %5, %7 : vector<2x128xf32>
    %c0_6 = arith.constant 0 : index
    %c0_7 = arith.constant 0 : index
    %9 = vector.load %arg4[%c0_6, %c0_7] : memref<128x49xf32, #tpu.memory_space<vmem>>, vector<128x49xf32>
    %cst_8 = arith.constant dense<0.000000e+00> : vector<2x49xf32>
    %10 = tpu.matmul %8, %9, %cst_8 {dimension_numbers = #tpu.dot_dimension_numbers<[1], [0], [0], [1], [0, 0, 1, 1], [], []>} : vector<2x128xf32>, vector<128x49xf32>, vector<2x49xf32> -> vector<2x49xf32>
    %c0_9 = arith.constant 0 : index
    %c0_10 = arith.constant 0 : index
    %11 = vector.load %arg5[%c0_9, %c0_10] : memref<1x49xf32, #tpu.memory_space<vmem>>, vector<1x49xf32>
    %12 = vector.broadcast %11 : vector<1x49xf32> to vector<2x49xf32>
    %13 = arith.addf %10, %12 : vector<2x49xf32>
    %c0_11 = arith.constant 0 : index
    %c0_12 = arith.constant 0 : index
    %14 = vector.load %arg6[%c0_11, %c0_12] : memref<2x49xf32, #tpu.memory_space<vmem>>, vector<2x49xf32>
    tpu.vector_store %arg6[%c0_11, %c0_12], %13 {strides = array<i32>} : memref<2x49xf32, #tpu.memory_space<vmem>>, vector<2x49xf32>,
    return
  }
  func.func @transform_0(%arg0: i32) -> (i32, i32) {
    %c0_i32 = arith.constant 0 : i32
    %c0_i32_0 = arith.constant 0 : i32
    return %arg0, %c0_i32 : i32, i32
  }
  func.func @transform_1(%arg0: i32) -> (i32, i32) {
    %c0_i32 = arith.constant 0 : i32
    %c0_i32_0 = arith.constant 0 : i32
    %c0_i32_1 = arith.constant 0 : i32
    return %c0_i32, %c0_i32_0 : i32, i32
  }
  func.func @transform_2(%arg0: i32) -> (i32, i32) {
    %c0_i32 = arith.constant 0 : i32
    %c0_i32_0 = arith.constant 0 : i32
    %c0_i32_1 = arith.constant 0 : i32
    return %c0_i32, %c0_i32_0 : i32, i32
  }
  func.func @transform_3(%arg0: i32) -> (i32, i32) {
    %c0_i32 = arith.constant 0 : i32
    %c0_i32_0 = arith.constant 0 : i32
    %c0_i32_1 = arith.constant 0 : i32
    return %c0_i32, %c0_i32_0 : i32, i32
  }
  func.func @transform_4(%arg0: i32) -> (i32, i32) {
    %c0_i32 = arith.constant 0 : i32
    %c0_i32_0 = arith.constant 0 : i32
    %c0_i32_1 = arith.constant 0 : i32
    return %c0_i32, %c0_i32_0 : i32, i32
  }
  func.func @transform_5(%arg0: i32) -> (i32, i32) {
    %c0_i32 = arith.constant 0 : i32
    %c0_i32_0 = arith.constant 0 : i32
    return %arg0, %c0_i32 : i32, i32
  }
}

</mosaic_0001>

<llo_original>
// kernel: policy_head.1
$region0: #{policy_head.1}
  #allocation0 [shape = 'u32[]', space=smem, size = 0x4, offset = 0x4, fixed_abs, tag = 'smem constant byte address 0x4 - core index']
  #allocation1 [shape = 'u32[144,128]{1,0:T(1,128)}', space=vmem, size = 0x12000, scoped, tag = 'internal scratch']
  %s0 = inlined_call_operand.vmem [shape: f32[2,49], index: 0, kind: input, shape index: {}]
  %s1 = inlined_call_operand.vmem [shape: f32[49,128], index: 1, kind: input, shape index: {}]
  %s2 = inlined_call_operand.vmem [shape: f32[1,128], index: 2, kind: input, shape index: {}]
  %s3 = inlined_call_operand.vmem [shape: f32[128,49], index: 3, kind: input, shape index: {}]
  %s4 = inlined_call_operand.vmem [shape: f32[1,49], index: 4, kind: input, shape index: {}]
  %s5 = inlined_call_operand.vmem [shape: f32[2,49], index: 5, kind: output, shape index: {}]
  %s6 = sld [smem:[#allocation0]]
  $region30: #{policy_head.1} parent=0
    _
  %s8 = ssub.s32 1, %s6
  %s9 = scalar_select 0, %s8, %s6
  // Predicated region
  $region2: #{policy_head.1} parent=0 // pred_check
    _
  $region3: #{policy_head.1} parent=0 // pred_check_branch
    %11 = sbr.rel (0) target = $region5
  $region4: #{policy_head.1} parent=0 // pred_region
    _
  $region5: #{policy_head.1} parent=0 // pred_fallthru
    _
  // Predicated region
  $region6: #{policy_head.1} parent=0 // pred_check
    _
  $region7: #{policy_head.1} parent=0 // pred_check_branch
    %13 = sbr.rel (0) target = $region9
  $region8: #{policy_head.1} parent=0 // pred_region
    _
  $region9: #{policy_head.1} parent=0 // pred_fallthru
    _
  // Predicated region
  $region10: #{policy_head.1} parent=0 // pred_check
    _
  $region11: #{policy_head.1} parent=0 // pred_check_branch
    %15 = sbr.rel (0) target = $region13
  $region12: #{policy_head.1} parent=0 // pred_region
    _
  $region13: #{policy_head.1} parent=0 // pred_fallthru
    _
  // Predicated region
  $region14: #{policy_head.1} parent=0 // pred_check
    _
  $region15: #{policy_head.1} parent=0 // pred_check_branch
    %17 = sbr.rel (0) target = $region17
  $region16: #{policy_head.1} parent=0 // pred_region
    _
  $region17: #{policy_head.1} parent=0 // pred_fallthru
    _
  // Predicated region
  $region18: #{policy_head.1} parent=0 // pred_check
    _
  $region19: #{policy_head.1} parent=0 // pred_check_branch
    %19 = sbr.rel (0) target = $region21
  $region20: #{policy_head.1} parent=0 // pred_region
    _
  $region21: #{policy_head.1} parent=0 // pred_fallthru
    _
  %v20 = vld [vmem:[%s0] sm:$0x3]
  %v21 = vld [vmem:[%s1] sm:$0xff]
  %v22 = vld [vmem:[%s1 + $0x8] sm:$0xff]
  %v23 = vld [vmem:[%s1 + $0x10] sm:$0xff]
  %v24 = vld [vmem:[%s1 + $0x18] sm:$0xff]
  %v25 = vld [vmem:[%s1 + $0x20] sm:$0xff]
  %v26 = vld [vmem:[%s1 + $0x28] sm:$0xff]
  %v27 = vld [vmem:[%s1 + $0x30] sm:$0x1]
  %v28 = vld [vmem:[%s2] sm:$0x1]
  %v30 = vlaneseq
  %v31 = vshrl.u32 %v30, 7
  %v32 = vsub.s32 0, %v31
  %v33 = vrot.slane %v28, %v32
  %vm35 = vcmask 400384
  %v37 = vsel %vm35, %v20, 0
  %vm39 = vcmask 1040384
  %v41 = vsel %vm39, %v27, 0
  %43 = vmatprep.subr.mxu0 0.0
  %44 = vmatpush1.msra.mxu0 0.0
  %45 = vmatprep.subr.mxu0 0.0
  %46 = vmatpush1.msra.mxu0 0.0
  %47 = vmatprep.subr.mxu0 0.0
  %48 = vmatpush1.msra.mxu0 0.0
  %49 = vmatprep.subr.mxu0 0.0
  %50 = vmatpush1.msra.mxu0 0.0
  %51 = vmatprep.subr.mxu0 0.0
  %52 = vmatpush1.msra.mxu0 0.0
  %53 = vmatprep.subr.mxu0 0.0
  %54 = vmatpush1.msra.mxu0 0.0
  %55 = vmatprep.subr.mxu0 0.0
  %56 = vmatpush1.msra.mxu0 0.0
  %57 = vmatprep.subr.mxu0 0.0
  %58 = vmatpush1.msra.mxu0 0.0
  %59 = vmatprep.subr.mxu0 0.0
  %60 = vmatpush1.msra.mxu0 0.0
  %61 = vmatprep.subr.mxu0 0.0
  %62 = vmatpush1.msra.mxu0 %v41
  %63 = vmatprep.subr.mxu0 0.0
  %64 = vmatpush1.msra.mxu0 %v26
  %65 = vmatprep.subr.mxu0 0.0
  %66 = vmatpush1.msra.mxu0 %v25
  %67 = vmatprep.subr.mxu0 0.0
  %68 = vmatpush1.msra.mxu0 %v24
  %69 = vmatprep.subr.mxu0 0.0
  %70 = vmatpush1.msra.mxu0 %v23
  %71 = vmatprep.subr.mxu0 0.0
  %72 = vmatpush1.msra.mxu0 %v22
  %73 = vmatprep.subr.mxu0 0.0
  %74 = vmatpush1.msra.mxu0 %v21
  %75 = vmatprep.subr.mxu0 0.0
  %76 = vmatpush2.msra.mxu0 0.0
  %77 = vmatprep.subr.mxu0 0.0
  %78 = vmatpush2.msra.mxu0 0.0
  %79 = vmatprep.subr.mxu0 0.0
  %80 = vmatpush2.msra.mxu0 0.0
  %81 = vmatprep.subr.mxu0 0.0
  %82 = vmatpush2.msra.mxu0 0.0
  %83 = vmatprep.subr.mxu0 0.0
  %84 = vmatpush2.msra.mxu0 0.0
  %85 = vmatprep.subr.mxu0 0.0
  %86 = vmatpush2.msra.mxu0 0.0
  %87 = vmatprep.subr.mxu0 0.0
  %88 = vmatpush2.msra.mxu0 0.0
  %89 = vmatprep.subr.mxu0 0.0
  %90 = vmatpush2.msra.mxu0 0.0
  %91 = vmatprep.subr.mxu0 0.0
  %92 = vmatpush2.msra.mxu0 0.0
  %93 = vmatprep.subr.mxu0 0.0
  %94 = vmatpush2.msra.mxu0 0.0
  %95 = vmatprep.subr.mxu0 0.0
  %96 = vmatpush2.msra.mxu0 0.0
  %97 = vmatprep.subr.mxu0 0.0
  %98 = vmatpush2.msra.mxu0 0.0
  %99 = vmatprep.subr.mxu0 0.0
  %100 = vmatpush2.msra.mxu0 0.0
  %101 = vmatprep.subr.mxu0 0.0
  %102 = vmatpush2.msra.mxu0 0.0
  %103 = vmatprep.subr.mxu0 0.0
  %104 = vmatpush2.msra.mxu0 0.0
  %105 = vmatprep.subr.mxu0 0.0
  %106 = vmatpush2.msra.mxu0 0.0
  %107 = vmatprep.mubr.f32.mxu0 0.0
  %108 = vmatmul.mubr.f32.gmra.mxu0 %v37
  %v109 = vpop.f32.mrf.mxu0
  %v110 = vadd.f32 %v33, %v109
  %v111 = vpop.f32.mrf.mxu0
  %112 = vdwg.mxu0
  %v113 = vmul.f32 %v110, 0.01
  %v114 = vmax.f32 %v110, %v113
  %v115 = vld [vmem:[%s3] sm:$0xff]
  %v116 = vld [vmem:[%s3 + $0x8] sm:$0xff]
  %v117 = vld [vmem:[%s3 + $0x10] sm:$0xff]
  %v118 = vld [vmem:[%s3 + $0x18] sm:$0xff]
  %v119 = vld [vmem:[%s3 + $0x20] sm:$0xff]
  %v120 = vld [vmem:[%s3 + $0x28] sm:$0xff]
  %v121 = vld [vmem:[%s3 + $0x30] sm:$0xff]
  %v122 = vld [vmem:[%s3 + $0x38] sm:$0xff]
  %v123 = vld [vmem:[%s3 + $0x40] sm:$0xff]
  %v124 = vld [vmem:[%s3 + $0x48] sm:$0xff]
  %v125 = vld [vmem:[%s3 + $0x50] sm:$0xff]
  %v126 = vld [vmem:[%s3 + $0x58] sm:$0xff]
  %v127 = vld [vmem:[%s3 + $0x60] sm:$0xff]
  %v128 = vld [vmem:[%s3 + $0x68] sm:$0xff]
  %v129 = vld [vmem:[%s3 + $0x70] sm:$0xff]
  %v130 = vld [vmem:[%s3 + $0x78] sm:$0xff]
  %v131 = vld [vmem:[%s4] sm:$0x1]
  %v133 = vlaneseq
  %v134 = vshrl.u32 %v133, 7
  %v135 = vsub.s32 0, %v134
  %v136 = vrot.slane %v131, %v135
  %138 = vmatprep.subr.mxu0 0.0
  %139 = vmatpush1.msra.mxu0 %v130
  %140 = vmatprep.subr.mxu0 0.0
  %141 = vmatpush1.msra.mxu0 %v129
  %142 = vmatprep.subr.mxu0 0.0
  %143 = vmatpush1.msra.mxu0 %v128
  %144 = vmatprep.subr.mxu0 0.0
  %145 = vmatpush1.msra.mxu0 %v127
  %146 = vmatprep.subr.mxu0 0.0
  %147 = vmatpush1.msra.mxu0 %v126
  %148 = vmatprep.subr.mxu0 0.0
  %149 = vmatpush1.msra.mxu0 %v125
  %150 = vmatprep.subr.mxu0 0.0
  %151 = vmatpush1.msra.mxu0 %v124
  %152 = vmatprep.subr.mxu0 0.0
  %153 = vmatpush1.msra.mxu0 %v123
  %154 = vmatprep.subr.mxu0 0.0
  %155 = vmatpush1.msra.mxu0 %v122
  %156 = vmatprep.subr.mxu0 0.0
  %157 = vmatpush1.msra.mxu0 %v121
  %158 = vmatprep.subr.mxu0 0.0
  %159 = vmatpush1.msra.mxu0 %v120
  %160 = vmatprep.subr.mxu0 0.0
  %161 = vmatpush1.msra.mxu0 %v119
  %162 = vmatprep.subr.mxu0 0.0
  %163 = vmatpush1.msra.mxu0 %v118
  %164 = vmatprep.subr.mxu0 0.0
  %165 = vmatpush1.msra.mxu0 %v117
  %166 = vmatprep.subr.mxu0 0.0
  %167 = vmatpush1.msra.mxu0 %v116
  %168 = vmatprep.subr.mxu0 0.0
  %169 = vmatpush1.msra.mxu0 %v115
  %170 = vmatprep.subr.mxu0 0.0
  %171 = vmatpush2.msra.mxu0 0.0
  %172 = vmatprep.subr.mxu0 0.0
  %173 = vmatpush2.msra.mxu0 0.0
  %174 = vmatprep.subr.mxu0 0.0
  %175 = vmatpush2.msra.mxu0 0.0
  %176 = vmatprep.subr.mxu0 0.0
  %177 = vmatpush2.msra.mxu0 0.0
  %178 = vmatprep.subr.mxu0 0.0
  %179 = vmatpush2.msra.mxu0 0.0
  %180 = vmatprep.subr.mxu0 0.0
  %181 = vmatpush2.msra.mxu0 0.0
  %182 = vmatprep.subr.mxu0 0.0
  %183 = vmatpush2.msra.mxu0 0.0
  %184 = vmatprep.subr.mxu0 0.0
  %185 = vmatpush2.msra.mxu0 0.0
  %186 = vmatprep.subr.mxu0 0.0
  %187 = vmatpush2.msra.mxu0 0.0
  %188 = vmatprep.subr.mxu0 0.0
  %189 = vmatpush2.msra.mxu0 0.0
  %190 = vmatprep.subr.mxu0 0.0
  %191 = vmatpush2.msra.mxu0 0.0
  %192 = vmatprep.subr.mxu0 0.0
  %193 = vmatpush2.msra.mxu0 0.0
  %194 = vmatprep.subr.mxu0 0.0
  %195 = vmatpush2.msra.mxu0 0.0
  %196 = vmatprep.subr.mxu0 0.0
  %197 = vmatpush2.msra.mxu0 0.0
  %198 = vmatprep.subr.mxu0 0.0
  %199 = vmatpush2.msra.mxu0 0.0
  %200 = vmatprep.subr.mxu0 0.0
  %201 = vmatpush2.msra.mxu0 0.0
  %202 = vmatprep.mubr.f32.mxu0 0.0
  %203 = vmatmul.mubr.f32.gmra.mxu0 %v114
  %v204 = vpop.f32.mrf.mxu0
  %v205 = vadd.f32 %v136, %v204
  %v206 = vpop.f32.mrf.mxu0
  %207 = vdwg.mxu0
  %vm208 = vcmask 394240
  %209 = vst.msk [vmem:[%s5] sm:$0x3] %vm208, %v205
  // Predicated region
  $region22: #{policy_head.1} parent=0 // pred_check
    _
  $region23: #{policy_head.1} parent=0 // pred_check_branch
    %211 = sbr.rel (0) target = $region25
  $region24: #{policy_head.1} parent=0 // pred_region
    _
  $region25: #{policy_head.1} parent=0 // pred_fallthru
    _
  // Predicated region
  $region26: #{policy_head.1} parent=0 // pred_check
    _
  $region27: #{policy_head.1} parent=0 // pred_check_branch
    %213 = sbr.rel (0) target = $region29
  $region28: #{policy_head.1} parent=0 // pred_region
    _
  $region29: #{policy_head.1} parent=0 // pred_fallthru
    _

</llo_original>
